<compile_context>
chip_gen: v5e
topology: v5e:2x2
jax: 0.10.0
libtpu: 0.0.40
codegen_flags: <defaults>
</compile_context>

<pallas_src>
import functools

import jax
import jax.numpy as jnp
from jax import lax
from jax.experimental import pallas as pl
from jax.experimental.pallas import tpu as pltpu

LANE = 128
SUBLANE = 8
TM_MAX = 8192            # rows per grid block: 8192x128 -> 9 MiB (f32+f32+int8) per step
INNER_ROWS = 256         # rows per in-kernel chunk (bounds VMEM temporaries to ~128 KiB each)
ROW_ALIGN = 32           # int8 mask tiles want a second-minor multiple of 32
VMEM_LIMIT_BYTES = 40 * 1024 * 1024   # 2 buffers x 9 MiB of inputs + small temps, with headroom


def _round_up(x, m):
    return (x + m - 1) // m * m


def _silog_partial_kernel(est_ref, gt_ref, mask_ref, out_ref, *,
                          tm, rs, n_inner, n_blocks, rows):
    o = pl.program_id(0)          # outer (core-parallel) chunk
    i = pl.program_id(1)          # inner (reduction) step
    b = o * n_inner + i           # logical block index (may overshoot: phantom block)

    @pl.when(i == 0)
    def _init():
        out_ref[...] = jnp.zeros_like(out_ref)

    n_chunks = tm // rs

    def _accumulate(ragged):
        # Chunk-relative row ids, hoisted out of the loop. Only the single ragged
        # (last) block pays for the iota + bounds test.
        row_ids = lax.broadcasted_iota(jnp.int32, (rs, LANE), 0) if ragged else None

        def body(c, carry):
            sd, sd2, sc = carry
            sl = pl.ds(pl.multiple_of(c * rs, rs), rs)
            valid = mask_ref[sl, :] != 0
            if ragged:
                # Rows past the true array extent hold garbage from the clamped DMA;
                # mask them with a row-bound test instead of padding in HBM.
                lim = rows - b * tm - c * rs
                valid = jnp.logical_and(valid, row_ids < lim)
            est = est_ref[sl, :].astype(jnp.float32)
            gt = gt_ref[sl, :].astype(jnp.float32)
            # One log of the ratio instead of two logs (halves EUP work); a single
            # post-log select zeroes invalid lanes (select does not propagate
            # NaN/Inf from unselected lanes, so no pre-log guards are needed).
            d = jnp.where(valid, jnp.log(est / gt), 0.0)
            cnt = valid.astype(jnp.int32)
            d3 = d.reshape(rs // SUBLANE, SUBLANE, LANE)
            c3 = cnt.reshape(rs // SUBLANE, SUBLANE, LANE)
            sd = sd + jnp.sum(d3, axis=0)
            sd2 = sd2 + jnp.sum(d3 * d3, axis=0)
            sc = sc + jnp.sum(c3, axis=0)
            return sd, sd2, sc

        zf = jnp.zeros((SUBLANE, LANE), jnp.float32)
        zi = jnp.zeros((SUBLANE, LANE), jnp.int32)
        sd, sd2, sc = lax.fori_loop(0, n_chunks, body, (zf, zf, zi))
        out_ref[0, 0] += sd
        out_ref[0, 1] += sd2
        out_ref[0, 2] += sc.astype(jnp.float32)   # count converted to f32 once per tile

    @pl.when(b < n_blocks - 1)       # fast path: every real block except the last
    def _fast():
        _accumulate(ragged=False)

    @pl.when(b == n_blocks - 1)      # last real block: mask the ragged tail rows
    def _slow():
        _accumulate(ragged=True)
    # Phantom trailing blocks (b >= n_blocks, odd n_blocks split 2 ways) skip both paths.


@functools.partial(jax.jit, static_argnums=(3,))
def silog_loss_pallas(depth_est, depth_gt, mask, variance_focus):
    """Computes silog loss; depth_est / depth_gt / mask are NCHW arrays of equal shape."""
    # Keep native floating dtypes (bf16 inputs stay 2 bytes/elem in HBM); only
    # non-float inputs are upcast. The kernel upcasts to f32 before the log.
    if not jnp.issubdtype(depth_est.dtype, jnp.floating):
        depth_est = depth_est.astype(jnp.float32)
    if not jnp.issubdtype(depth_gt.dtype, jnp.floating):
        depth_gt = depth_gt.astype(jnp.float32)

    # Mask travels as 1 byte/elem (bool/int8), not f32.
    if mask.dtype == jnp.bool_:
        mask8 = mask.astype(jnp.int8)
    elif mask.dtype == jnp.int8:
        mask8 = mask
    else:
        mask8 = (mask != 0).astype(jnp.int8)

    est = depth_est.reshape(-1)
    gt = depth_gt.reshape(-1)
    m8 = mask8.reshape(-1)
    total = est.shape[0]

    # Only pad to the next multiple of 128 so the flat stream can be viewed as a
    # lane-dense [rows, 128] slab (typical depth maps need no padding at all).
    pad = (-total) % LANE
    if pad:
        est = jnp.pad(est, (0, pad), constant_values=1.0)
        gt = jnp.pad(gt, (0, pad), constant_values=1.0)
        m8 = jnp.pad(m8, (0, pad), constant_values=0)

    rows = (total + pad) // LANE
    est2 = est.reshape(rows, LANE)
    gt2 = gt.reshape(rows, LANE)
    m2 = m8.reshape(rows, LANE)

    # Grid block height: large (amortize per-step overhead), multiple of the
    # in-kernel chunk size so the chunk loop tiles it exactly.
    if rows >= INNER_ROWS:
        tm = min(TM_MAX, _round_up(rows, INNER_ROWS))
        rs = INNER_ROWS
    else:
        tm = _round_up(rows, ROW_ALIGN)
        rs = tm

    n_blocks = pl.cdiv(rows, tm)
    # 2-way split across TensorCores on v7x; on 1-TC chips it is just a cheap
    # sequential split of the same reduction.
    n_outer = 2 if n_blocks >= 2 else 1
    n_inner = pl.cdiv(n_blocks, n_outer)

    def in_map(o, i):
        # Clamp phantom trailing blocks (odd n_blocks) onto the last real block so the
        # pipelined DMA never walks past the array; their contribution is skipped
        # inside the kernel.
        return (jnp.minimum(o * n_inner + i, n_blocks - 1), 0)

    kernel = functools.partial(
        _silog_partial_kernel, tm=tm, rs=rs, n_inner=n_inner,
        n_blocks=n_blocks, rows=rows)

    tile_spec = pl.BlockSpec((tm, LANE), in_map)

    partials = pl.pallas_call(
        kernel,
        out_shape=jax.ShapeDtypeStruct((n_outer, 3, SUBLANE, LANE), jnp.float32),
        grid=(n_outer, n_inner),
        in_specs=[tile_spec, tile_spec, pl.BlockSpec((tm, LANE), in_map)],
        out_specs=pl.BlockSpec((1, 3, SUBLANE, LANE), lambda o, i: (o, 0, 0, 0)),
        compiler_params=pltpu.CompilerParams(
            dimension_semantics=("parallel", "arbitrary"),
            vmem_limit_bytes=VMEM_LIMIT_BYTES),
    )(est2, gt2, m2)

    # Single tiny cross-lane reduction + scalar epilogue (negligible vs. the stream).
    sums = jnp.sum(partials, axis=(0, 2, 3))      # [sum(d), sum(d^2), count]
    n = sums[2]
    mean_d = sums[0] / n
    mean_d2 = sums[1] / n
    # NOTE: like the PyTorch module, this yields NaN for an all-zero mask, and could
    # yield NaN if fp rounding drives the sqrt argument slightly negative
    # (variance_focus ~ 1 with near-constant d) -- semantics intentionally preserved.
    return jnp.sqrt(mean_d2 - variance_focus * mean_d * mean_d) * 10.0


def silog_loss_ref(depth_est, depth_gt, mask, variance_focus):
    """Pure-JAX reference (masked-sum reformulation of the PyTorch code)."""
    mf = mask.astype(jnp.float32)
    d = jnp.where(mask, jnp.log(depth_est) - jnp.log(depth_gt), 0.0)
    n = jnp.sum(mf)
    mean_d = jnp.sum(d) / n
    mean_d2 = jnp.sum(d * d) / n
    return jnp.sqrt(mean_d2 - variance_focus * mean_d ** 2) * 10.0


if __name__ == "__main__":
    variance_focus = 0.85

    # Small NCHW sanity check (single block, exercises the ragged-tail path).
    k1, k2, k3 = jax.random.split(jax.random.PRNGKey(0), 3)
    N, C, H, W = 2, 1, 16, 16
    depth_est = jax.random.uniform(k1, (N, C, H, W), jnp.float32, 0.1, 10.0)
    depth_gt = jax.random.uniform(k2, (N, C, H, W), jnp.float32, 0.1, 10.0)
    mask = jax.random.uniform(k3, (N, C, H, W), jnp.float32) > 0.3

    loss = jax.block_until_ready(
        silog_loss_pallas(depth_est, depth_gt, mask, variance_focus))
    ref = jax.block_until_ready(
        silog_loss_ref(depth_est, depth_gt, mask, variance_focus))
    assert jnp.allclose(loss, ref, rtol=1e-5, atol=1e-6), (loss, ref)

    # NYU-sized batch: exercises multiple blocks (fast + ragged paths), the 2-way
    # outer split and the chunked inner reduction loop.
    k4, k5, k6 = jax.random.split(jax.random.PRNGKey(1), 3)
    N2, C2, H2, W2 = 4, 1, 480, 640
    depth_est2 = jax.random.uniform(k4, (N2, C2, H2, W2), jnp.float32, 0.1, 10.0)
    depth_gt2 = jax.random.uniform(k5, (N2, C2, H2, W2), jnp.float32, 0.1, 10.0)
    mask2 = jax.random.uniform(k6, (N2, C2, H2, W2), jnp.float32) > 0.3

    loss2 = jax.block_until_ready(
        silog_loss_pallas(depth_est2, depth_gt2, mask2, variance_focus))
    ref2 = jax.block_until_ready(
        silog_loss_ref(depth_est2, depth_gt2, mask2, variance_focus))
    assert jnp.allclose(loss2, ref2, rtol=1e-4, atol=1e-5), (loss2, ref2)

    print("KERNEL_OK")
</pallas_src>

<mosaic_0001>
module attributes {stable_mosaic.version = 11 : i64} {
  func.func @_silog_partial_kernel(%arg0: i32, %arg1: i32, %arg2: memref<32x128xf32, #tpu.memory_space<vmem>>, %arg3: memref<32x128xf32, #tpu.memory_space<vmem>>, %arg4: memref<32x128xi8, #tpu.memory_space<vmem>>, %arg5: memref<1x3x8x128xf32, #tpu.memory_space<vmem>>) attributes {dimension_semantics = [#tpu.dimension_semantics<parallel>, #tpu.dimension_semantics<arbitrary>], iteration_bounds = array<i64: 1, 1>, scalar_prefetch = 0 : i64, scratch_operands = 0 : i64, tpu.core_type = #tpu.core_type<tc>, window_params = [{transform_indices = @transform_0, window_bounds = array<i64: 32, 128>}, {transform_indices = @transform_1, window_bounds = array<i64: 32, 128>}, {transform_indices = @transform_2, window_bounds = array<i64: 32, 128>}, {transform_indices = @transform_3, window_bounds = array<i64: 1, 3, 8, 128>}]} {
    %c1_i32 = arith.constant 1 : i32
    %0 = arith.muli %arg0, %c1_i32 : i32
    %1 = arith.addi %0, %arg1 : i32
    %c0_i32 = arith.constant 0 : i32
    %2 = arith.cmpi eq, %arg1, %c0_i32 : i32
    %3 = arith.extui %2 : i1 to i32
    %c0_i32_0 = arith.constant 0 : i32
    %4 = arith.cmpi ne, %3, %c0_i32_0 : i32
    scf.if %4 {
      %cst = arith.constant 0.000000e+00 : f32
      %11 = vector.broadcast %cst : f32 to vector<1x3x8x128xf32>
      %c0 = arith.constant 0 : index
      %c0_5 = arith.constant 0 : index
      %c0_6 = arith.constant 0 : index
      %c0_7 = arith.constant 0 : index
      %12 = vector.load %arg5[%c0, %c0_5, %c0_6, %c0_7] : memref<1x3x8x128xf32, #tpu.memory_space<vmem>>, vector<1x3x8x128xf32>
      tpu.vector_store %arg5[%c0, %c0_5, %c0_6, %c0_7], %11 {strides = array<i32>} : memref<1x3x8x128xf32, #tpu.memory_space<vmem>>, vector<1x3x8x128xf32>,
    } else {
    }
    %c0_i32_1 = arith.constant 0 : i32
    %5 = arith.cmpi slt, %1, %c0_i32_1 : i32
    %6 = arith.extui %5 : i1 to i32
    %c0_i32_2 = arith.constant 0 : i32
    %7 = arith.cmpi ne, %6, %c0_i32_2 : i32
    scf.if %7 {
      %cst = arith.constant 0.000000e+00 : f32
      %11 = vector.broadcast %cst : f32 to vector<8x128xf32>
      %c0_i32_5 = arith.constant 0 : i32
      %12 = vector.broadcast %c0_i32_5 : i32 to vector<8x128xi32>
      %c0_i32_6 = arith.constant 0 : i32
      %c32_i32 = arith.constant 32 : i32
      %13 = arith.muli %c0_i32_6, %c32_i32 : i32
      %14 = tpu.assume_multiple %13, 32 : i32
      %15 = arith.index_cast %14 : i32 to index
      %c0 = arith.constant 0 : index
      %16 = vector.load %arg4[%15, %c0] : memref<32x128xi8, #tpu.memory_space<vmem>>, vector<32x128xi8>
      %c0_i8 = arith.constant 0 : i8
      %17 = vector.broadcast %c0_i8 : i8 to vector<32x128xi8>
      %18 = arith.cmpi ne, %16, %17 : vector<32x128xi8>
      %19 = arith.index_cast %14 : i32 to index
      %c0_7 = arith.constant 0 : index
      %20 = vector.load %arg2[%19, %c0_7] : memref<32x128xf32, #tpu.memory_space<vmem>>, vector<32x128xf32>
      %21 = arith.index_cast %14 : i32 to index
      %c0_8 = arith.constant 0 : index
      %22 = vector.load %arg3[%21, %c0_8] : memref<32x128xf32, #tpu.memory_space<vmem>>, vector<32x128xf32>
      %23 = arith.divf %20, %22 : vector<32x128xf32>
      %24 = math.log %23 : vector<32x128xf32>
      %cst_9 = arith.constant 0.000000e+00 : f32
      %25 = vector.broadcast %cst_9 : f32 to vector<32x128xf32>
      %26 = arith.select %18, %24, %25 : vector<32x128xi1>, vector<32x128xf32>
      %27 = arith.extui %18 : vector<32x128xi1> to vector<32x128xi32>
      %28 = vector.shape_cast %26 : vector<32x128xf32> to vector<4x8x128xf32>
      %29 = vector.shape_cast %27 : vector<32x128xi32> to vector<4x8x128xi32>
      %cst_10 = arith.constant dense<0.000000e+00> : vector<8x128xf32>
      %30 = vector.multi_reduction <add>, %28, %cst_10 [0] : vector<4x8x128xf32> to vector<8x128xf32>
      %31 = arith.addf %11, %30 : vector<8x128xf32>
      %32 = arith.mulf %28, %28 : vector<4x8x128xf32>
      %cst_11 = arith.constant dense<0.000000e+00> : vector<8x128xf32>
      %33 = vector.multi_reduction <add>, %32, %cst_11 [0] : vector<4x8x128xf32> to vector<8x128xf32>
      %34 = arith.addf %11, %33 : vector<8x128xf32>
      %cst_12 = arith.constant dense<0> : vector<8x128xi32>
      %35 = vector.multi_reduction <add>, %29, %cst_12 [0] : vector<4x8x128xi32> to vector<8x128xi32>
      %36 = arith.addi %12, %35 : vector<8x128xi32>
      %c1_i32_13 = arith.constant 1 : i32
      %c0_14 = arith.constant 0 : index
      %c0_15 = arith.constant 0 : index
      %c0_16 = arith.constant 0 : index
      %c0_17 = arith.constant 0 : index
      %37 = vector.load %arg5[%c0_14, %c0_15, %c0_16, %c0_17] : memref<1x3x8x128xf32, #tpu.memory_space<vmem>>, vector<1x1x8x128xf32>
      %38 = vector.shape_cast %37 : vector<1x1x8x128xf32> to vector<8x128xf32>
      %39 = arith.addf %38, %31 : vector<8x128xf32>
      %c0_18 = arith.constant 0 : index
      %c0_19 = arith.constant 0 : index
      %c0_20 = arith.constant 0 : index
      %c0_21 = arith.constant 0 : index
      %40 = vector.load %arg5[%c0_18, %c0_19, %c0_20, %c0_21] : memref<1x3x8x128xf32, #tpu.memory_space<vmem>>, vector<1x1x8x128xf32>
      %41 = vector.shape_cast %40 : vector<1x1x8x128xf32> to vector<8x128xf32>
      %42 = vector.shape_cast %39 : vector<8x128xf32> to vector<1x1x8x128xf32>
      tpu.vector_store %arg5[%c0_18, %c0_19, %c0_20, %c0_21], %42 {strides = array<i32>} : memref<1x3x8x128xf32, #tpu.memory_space<vmem>>, vector<1x1x8x128xf32>,
      %c0_22 = arith.constant 0 : index
      %c1 = arith.constant 1 : index
      %c0_23 = arith.constant 0 : index
      %c0_24 = arith.constant 0 : index
      %43 = vector.load %arg5[%c0_22, %c1, %c0_23, %c0_24] : memref<1x3x8x128xf32, #tpu.memory_space<vmem>>, vector<1x1x8x128xf32>
      %44 = vector.shape_cast %43 : vector<1x1x8x128xf32> to vector<8x128xf32>
      %45 = arith.addf %44, %34 : vector<8x128xf32>
      %c0_25 = arith.constant 0 : index
      %c1_26 = arith.constant 1 : index
      %c0_27 = arith.constant 0 : index
      %c0_28 = arith.constant 0 : index
      %46 = vector.load %arg5[%c0_25, %c1_26, %c0_27, %c0_28] : memref<1x3x8x128xf32, #tpu.memory_space<vmem>>, vector<1x1x8x128xf32>
      %47 = vector.shape_cast %46 : vector<1x1x8x128xf32> to vector<8x128xf32>
      %48 = vector.shape_cast %45 : vector<8x128xf32> to vector<1x1x8x128xf32>
      tpu.vector_store %arg5[%c0_25, %c1_26, %c0_27, %c0_28], %48 {strides = array<i32>} : memref<1x3x8x128xf32, #tpu.memory_space<vmem>>, vector<1x1x8x128xf32>,
      %c0_29 = arith.constant 0 : index
      %c2 = arith.constant 2 : index
      %c0_30 = arith.constant 0 : index
      %c0_31 = arith.constant 0 : index
      %49 = vector.load %arg5[%c0_29, %c2, %c0_30, %c0_31] : memref<1x3x8x128xf32, #tpu.memory_space<vmem>>, vector<1x1x8x128xf32>
      %50 = vector.shape_cast %49 : vector<1x1x8x128xf32> to vector<8x128xf32>
      %51 = arith.sitofp %36 : vector<8x128xi32> to vector<8x128xf32>
      %52 = arith.addf %50, %51 : vector<8x128xf32>
      %c0_32 = arith.constant 0 : index
      %c2_33 = arith.constant 2 : index
      %c0_34 = arith.constant 0 : index
      %c0_35 = arith.constant 0 : index
      %53 = vector.load %arg5[%c0_32, %c2_33, %c0_34, %c0_35] : memref<1x3x8x128xf32, #tpu.memory_space<vmem>>, vector<1x1x8x128xf32>
      %54 = vector.shape_cast %53 : vector<1x1x8x128xf32> to vector<8x128xf32>
      %55 = vector.shape_cast %52 : vector<8x128xf32> to vector<1x1x8x128xf32>
      tpu.vector_store %arg5[%c0_32, %c2_33, %c0_34, %c0_35], %55 {strides = array<i32>} : memref<1x3x8x128xf32, #tpu.memory_space<vmem>>, vector<1x1x8x128xf32>,
    } else {
    }
    %c0_i32_3 = arith.constant 0 : i32
    %8 = arith.cmpi eq, %1, %c0_i32_3 : i32
    %9 = arith.extui %8 : i1 to i32
    %c0_i32_4 = arith.constant 0 : i32
    %10 = arith.cmpi ne, %9, %c0_i32_4 : i32
    scf.if %10 {
      %11 = tpu.iota {dimensions = array<i32: 0>} : vector<32x128xi32>
      %cst = arith.constant 0.000000e+00 : f32
      %12 = vector.broadcast %cst : f32 to vector<8x128xf32>
      %c0_i32_5 = arith.constant 0 : i32
      %13 = vector.broadcast %c0_i32_5 : i32 to vector<8x128xi32>
      %c0_i32_6 = arith.constant 0 : i32
      %c32_i32 = arith.constant 32 : i32
      %14 = arith.muli %c0_i32_6, %c32_i32 : i32
      %15 = tpu.assume_multiple %14, 32 : i32
      %16 = arith.index_cast %15 : i32 to index
      %c0 = arith.constant 0 : index
      %17 = vector.load %arg4[%16, %c0] : memref<32x128xi8, #tpu.memory_space<vmem>>, vector<32x128xi8>
      %c0_i8 = arith.constant 0 : i8
      %18 = vector.broadcast %c0_i8 : i8 to vector<32x128xi8>
      %19 = arith.cmpi ne, %17, %18 : vector<32x128xi8>
      %c32_i32_7 = arith.constant 32 : i32
      %20 = arith.muli %1, %c32_i32_7 : i32
      %c4_i32 = arith.constant 4 : i32
      %21 = arith.subi %c4_i32, %20 : i32
      %c32_i32_8 = arith.constant 32 : i32
      %22 = arith.muli %c0_i32_6, %c32_i32_8 : i32
      %23 = arith.subi %21, %22 : i32
      %24 = vector.broadcast %23 : i32 to vector<32x128xi32>
      %25 = arith.cmpi slt, %11, %24 : vector<32x128xi32>
      %26 = arith.andi %19, %25 : vector<32x128xi1>
      %27 = arith.index_cast %15 : i32 to index
      %c0_9 = arith.constant 0 : index
      %28 = vector.load %arg2[%27, %c0_9] : memref<32x128xf32, #tpu.memory_space<vmem>>, vector<32x128xf32>
      %29 = arith.index_cast %15 : i32 to index
      %c0_10 = arith.constant 0 : index
      %30 = vector.load %arg3[%29, %c0_10] : memref<32x128xf32, #tpu.memory_space<vmem>>, vector<32x128xf32>
      %31 = arith.divf %28, %30 : vector<32x128xf32>
      %32 = math.log %31 : vector<32x128xf32>
      %cst_11 = arith.constant 0.000000e+00 : f32
      %33 = vector.broadcast %cst_11 : f32 to vector<32x128xf32>
      %34 = arith.select %26, %32, %33 : vector<32x128xi1>, vector<32x128xf32>
      %35 = arith.extui %26 : vector<32x128xi1> to vector<32x128xi32>
      %36 = vector.shape_cast %34 : vector<32x128xf32> to vector<4x8x128xf32>
      %37 = vector.shape_cast %35 : vector<32x128xi32> to vector<4x8x128xi32>
      %cst_12 = arith.constant dense<0.000000e+00> : vector<8x128xf32>
      %38 = vector.multi_reduction <add>, %36, %cst_12 [0] : vector<4x8x128xf32> to vector<8x128xf32>
      %39 = arith.addf %12, %38 : vector<8x128xf32>
      %40 = arith.mulf %36, %36 : vector<4x8x128xf32>
      %cst_13 = arith.constant dense<0.000000e+00> : vector<8x128xf32>
      %41 = vector.multi_reduction <add>, %40, %cst_13 [0] : vector<4x8x128xf32> to vector<8x128xf32>
      %42 = arith.addf %12, %41 : vector<8x128xf32>
      %cst_14 = arith.constant dense<0> : vector<8x128xi32>
      %43 = vector.multi_reduction <add>, %37, %cst_14 [0] : vector<4x8x128xi32> to vector<8x128xi32>
      %44 = arith.addi %13, %43 : vector<8x128xi32>
      %c1_i32_15 = arith.constant 1 : i32
      %c0_16 = arith.constant 0 : index
      %c0_17 = arith.constant 0 : index
      %c0_18 = arith.constant 0 : index
      %c0_19 = arith.constant 0 : index
      %45 = vector.load %arg5[%c0_16, %c0_17, %c0_18, %c0_19] : memref<1x3x8x128xf32, #tpu.memory_space<vmem>>, vector<1x1x8x128xf32>
      %46 = vector.shape_cast %45 : vector<1x1x8x128xf32> to vector<8x128xf32>
      %47 = arith.addf %46, %39 : vector<8x128xf32>
      %c0_20 = arith.constant 0 : index
      %c0_21 = arith.constant 0 : index
      %c0_22 = arith.constant 0 : index
      %c0_23 = arith.constant 0 : index
      %48 = vector.load %arg5[%c0_20, %c0_21, %c0_22, %c0_23] : memref<1x3x8x128xf32, #tpu.memory_space<vmem>>, vector<1x1x8x128xf32>
      %49 = vector.shape_cast %48 : vector<1x1x8x128xf32> to vector<8x128xf32>
      %50 = vector.shape_cast %47 : vector<8x128xf32> to vector<1x1x8x128xf32>
      tpu.vector_store %arg5[%c0_20, %c0_21, %c0_22, %c0_23], %50 {strides = array<i32>} : memref<1x3x8x128xf32, #tpu.memory_space<vmem>>, vector<1x1x8x128xf32>,
      %c0_24 = arith.constant 0 : index
      %c1 = arith.constant 1 : index
      %c0_25 = arith.constant 0 : index
      %c0_26 = arith.constant 0 : index
      %51 = vector.load %arg5[%c0_24, %c1, %c0_25, %c0_26] : memref<1x3x8x128xf32, #tpu.memory_space<vmem>>, vector<1x1x8x128xf32>
      %52 = vector.shape_cast %51 : vector<1x1x8x128xf32> to vector<8x128xf32>
      %53 = arith.addf %52, %42 : vector<8x128xf32>
      %c0_27 = arith.constant 0 : index
      %c1_28 = arith.constant 1 : index
      %c0_29 = arith.constant 0 : index
      %c0_30 = arith.constant 0 : index
      %54 = vector.load %arg5[%c0_27, %c1_28, %c0_29, %c0_30] : memref<1x3x8x128xf32, #tpu.memory_space<vmem>>, vector<1x1x8x128xf32>
      %55 = vector.shape_cast %54 : vector<1x1x8x128xf32> to vector<8x128xf32>
      %56 = vector.shape_cast %53 : vector<8x128xf32> to vector<1x1x8x128xf32>
      tpu.vector_store %arg5[%c0_27, %c1_28, %c0_29, %c0_30], %56 {strides = array<i32>} : memref<1x3x8x128xf32, #tpu.memory_space<vmem>>, vector<1x1x8x128xf32>,
      %c0_31 = arith.constant 0 : index
      %c2 = arith.constant 2 : index
      %c0_32 = arith.constant 0 : index
      %c0_33 = arith.constant 0 : index
      %57 = vector.load %arg5[%c0_31, %c2, %c0_32, %c0_33] : memref<1x3x8x128xf32, #tpu.memory_space<vmem>>, vector<1x1x8x128xf32>
      %58 = vector.shape_cast %57 : vector<1x1x8x128xf32> to vector<8x128xf32>
      %59 = arith.sitofp %44 : vector<8x128xi32> to vector<8x128xf32>
      %60 = arith.addf %58, %59 : vector<8x128xf32>
      %c0_34 = arith.constant 0 : index
      %c2_35 = arith.constant 2 : index
      %c0_36 = arith.constant 0 : index
      %c0_37 = arith.constant 0 : index
      %61 = vector.load %arg5[%c0_34, %c2_35, %c0_36, %c0_37] : memref<1x3x8x128xf32, #tpu.memory_space<vmem>>, vector<1x1x8x128xf32>
      %62 = vector.shape_cast %61 : vector<1x1x8x128xf32> to vector<8x128xf32>
      %63 = vector.shape_cast %60 : vector<8x128xf32> to vector<1x1x8x128xf32>
      tpu.vector_store %arg5[%c0_34, %c2_35, %c0_36, %c0_37], %63 {strides = array<i32>} : memref<1x3x8x128xf32, #tpu.memory_space<vmem>>, vector<1x1x8x128xf32>,
    } else {
    }
    return
  }
  func.func @transform_0(%arg0: i32, %arg1: i32) -> (i32, i32) {
    %c1_i32 = arith.constant 1 : i32
    %0 = arith.muli %arg0, %c1_i32 : i32
    %1 = arith.addi %0, %arg1 : i32
    %c0_i32 = arith.constant 0 : i32
    %2 = arith.minsi %1, %c0_i32 : i32
    %c0_i32_0 = arith.constant 0 : i32
    %c0_i32_1 = arith.constant 0 : i32
    return %2, %c0_i32_0 : i32, i32
  }
  func.func @transform_1(%arg0: i32, %arg1: i32) -> (i32, i32) {
    %c1_i32 = arith.constant 1 : i32
    %0 = arith.muli %arg0, %c1_i32 : i32
    %1 = arith.addi %0, %arg1 : i32
    %c0_i32 = arith.constant 0 : i32
    %2 = arith.minsi %1, %c0_i32 : i32
    %c0_i32_0 = arith.constant 0 : i32
    %c0_i32_1 = arith.constant 0 : i32
    return %2, %c0_i32_0 : i32, i32
  }
  func.func @transform_2(%arg0: i32, %arg1: i32) -> (i32, i32) {
    %c1_i32 = arith.constant 1 : i32
    %0 = arith.muli %arg0, %c1_i32 : i32
    %1 = arith.addi %0, %arg1 : i32
    %c0_i32 = arith.constant 0 : i32
    %2 = arith.minsi %1, %c0_i32 : i32
    %c0_i32_0 = arith.constant 0 : i32
    %c0_i32_1 = arith.constant 0 : i32
    return %2, %c0_i32_0 : i32, i32
  }
  func.func @transform_3(%arg0: i32, %arg1: i32) -> (i32, i32, i32, i32) {
    %c0_i32 = arith.constant 0 : i32
    %c0_i32_0 = arith.constant 0 : i32
    %c0_i32_1 = arith.constant 0 : i32
    %c0_i32_2 = arith.constant 0 : i32
    return %arg0, %c0_i32, %c0_i32_0, %c0_i32_1 : i32, i32, i32, i32
  }
}

</mosaic_0001>

<llo_original>
// kernel: silog_loss_pallas.1
$region0: #{silog_loss_pallas.1}
  #allocation0 [shape = 'u32[]', space=smem, size = 0x4, offset = 0x4, fixed_abs, tag = 'smem constant byte address 0x4 - core index']
  #allocation1 [shape = 'u32[72,128]{1,0:T(1,128)}', space=vmem, size = 0x9000, scoped, tag = 'internal scratch']
  %s0 = inlined_call_operand.vmem [shape: f32[4,128], index: 0, kind: input, shape index: {}]
  %s1 = inlined_call_operand.vmem [shape: f32[4,128], index: 1, kind: input, shape index: {}]
  %s2 = inlined_call_operand.vmem [shape: s8[4,128], index: 2, kind: input, shape index: {}]
  %s3 = inlined_call_operand.vmem [shape: f32[1,3,8,128], index: 3, kind: output, shape index: {}]
  %s4 = sld [smem:[#allocation0]]
  $region34: #{silog_loss_pallas.1} parent=0
    _
  %s6 = ssub.s32 1, %s4
  %s7 = scalar_select 0, %s6, %s4
  // Predicated region
  $region2: #{silog_loss_pallas.1} parent=0 // pred_check
    _
  $region3: #{silog_loss_pallas.1} parent=0 // pred_check_branch
    %9 = sbr.rel (0) target = $region5
  $region4: #{silog_loss_pallas.1} parent=0 // pred_region
    %s10 = sadd.s32 0, 0
    %p11 = scmp.lt.s32.totalorder %s10, 0
    %s12 = scalar_select %p11, %s10, 0
    %s13 = smul.u32 8, %s12
    %s14 = ssub.s32 1, %s13
    %s15 = smul.u32 4, %s14
    %p16 = scmp.lt.s32.totalorder %s13, 0
    %s17 = scalar_select %p16, %s13, 0
    %s18 = smul.addr %s17, 4
    %s19 = scalar_lea.vmem %s0, %s18
    %s20 = sadd.s32 0, 0
    %p21 = scmp.lt.s32.totalorder %s20, 0
    %s22 = scalar_select %p21, %s20, 0
    %s23 = smul.u32 8, %s22
    %s24 = ssub.s32 1, %s23
    %s25 = smul.u32 4, %s24
  $region5: #{silog_loss_pallas.1} parent=0 // pred_fallthru
    _
  // Predicated region
  $region6: #{silog_loss_pallas.1} parent=0 // pred_check
    _
  $region7: #{silog_loss_pallas.1} parent=0 // pred_check_branch
    %27 = sbr.rel (0) target = $region9
  $region8: #{silog_loss_pallas.1} parent=0 // pred_region
    %s28 = sadd.s32 0, 0
    %p29 = scmp.lt.s32.totalorder %s28, 0
    %s30 = scalar_select %p29, %s28, 0
    %s31 = smul.u32 8, %s30
    %s32 = ssub.s32 1, %s31
    %s33 = smul.u32 4, %s32
    %p34 = scmp.lt.s32.totalorder %s31, 0
    %s35 = scalar_select %p34, %s31, 0
    %s36 = smul.addr %s35, 4
    %s37 = scalar_lea.vmem %s1, %s36
    %s38 = sadd.s32 0, 0
    %p39 = scmp.lt.s32.totalorder %s38, 0
    %s40 = scalar_select %p39, %s38, 0
    %s41 = smul.u32 8, %s40
    %s42 = ssub.s32 1, %s41
    %s43 = smul.u32 4, %s42
  $region9: #{silog_loss_pallas.1} parent=0 // pred_fallthru
    _
  // Predicated region
  $region10: #{silog_loss_pallas.1} parent=0 // pred_check
    _
  $region11: #{silog_loss_pallas.1} parent=0 // pred_check_branch
    %45 = sbr.rel (0) target = $region13
  $region12: #{silog_loss_pallas.1} parent=0 // pred_region
    %s46 = sadd.s32 0, 0
    %p47 = scmp.lt.s32.totalorder %s46, 0
    %s48 = scalar_select %p47, %s46, 0
    %s49 = smul.u32 8, %s48
    %s50 = ssub.s32 1, %s49
    %p51 = scmp.lt.s32.totalorder %s49, 0
    %s52 = scalar_select %p51, %s49, 0
    %s53 = scalar_lea.vmem %s2, %s52
    %s54 = sadd.s32 0, 0
    %p55 = scmp.lt.s32.totalorder %s54, 0
    %s56 = scalar_select %p55, %s54, 0
    %s57 = smul.u32 8, %s56
    %s58 = ssub.s32 1, %s57
  $region13: #{silog_loss_pallas.1} parent=0 // pred_fallthru
    _
  %s59 = sadd.s32 0, 0
  %p60 = scmp.lt.s32.totalorder %s59, 0
  %s61 = scalar_select %p60, %s59, 0
  %s62 = smul.u32 8, %s61
  %s63 = ssub.s32 1, %s62
  %s64 = smul.u32 4, %s63
  %p65 = scmp.lt.s32.totalorder %s62, 0
  %s66 = scalar_select %p65, %s62, 0
  %s67 = smul.addr %s66, 4
  %s68 = scalar_lea.vmem %s0, %s67
  %s69 = sadd.s32 0, 0
  %p70 = scmp.lt.s32.totalorder %s69, 0
  %s71 = scalar_select %p70, %s69, 0
  %s72 = smul.u32 8, %s71
  %s73 = ssub.s32 1, %s72
  %s74 = smul.u32 4, %s73
  %p75 = scmp.lt.s32.totalorder %s72, 0
  %s76 = scalar_select %p75, %s72, 0
  %s77 = smul.addr %s76, 4
  %s78 = scalar_lea.vmem %s1, %s77
  %s79 = sadd.s32 0, 0
  %p80 = scmp.lt.s32.totalorder %s79, 0
  %s81 = scalar_select %p80, %s79, 0
  %s82 = smul.u32 8, %s81
  %s83 = ssub.s32 1, %s82
  %p84 = scmp.lt.s32.totalorder %s82, 0
  %s85 = scalar_select %p84, %s82, 0
  %s86 = scalar_lea.vmem %s2, %s85
  %s87 = sadd.s32 0, 0
  %p88 = scmp.lt.s32.totalorder %s87, 0
  %s89 = scalar_select %p88, %s87, 0
  %s90 = smul.u32 8, %s89
  %s91 = ssub.s32 1, %s90
  %s92 = smul.u32 4, %s91
  %p93 = scmp.lt.s32.totalorder %s90, 0
  %s94 = scalar_select %p93, %s90, 0
  %s95 = smul.addr %s94, 4
  %s96 = scalar_lea.vmem %s0, %s95
  %s97 = sadd.s32 0, 0
  %p98 = scmp.lt.s32.totalorder %s97, 0
  %s99 = scalar_select %p98, %s97, 0
  %s100 = smul.u32 8, %s99
  %s101 = ssub.s32 1, %s100
  %s102 = smul.u32 4, %s101
  %s103 = sadd.s32 0, 0
  %p104 = scmp.lt.s32.totalorder %s103, 0
  %s105 = scalar_select %p104, %s103, 0
  %s106 = smul.u32 8, %s105
  %s107 = ssub.s32 1, %s106
  %s108 = smul.u32 4, %s107
  %p109 = scmp.lt.s32.totalorder %s106, 0
  %s110 = scalar_select %p109, %s106, 0
  %s111 = smul.addr %s110, 4
  %s112 = scalar_lea.vmem %s1, %s111
  %s113 = sadd.s32 0, 0
  %p114 = scmp.lt.s32.totalorder %s113, 0
  %s115 = scalar_select %p114, %s113, 0
  %s116 = smul.u32 8, %s115
  %s117 = ssub.s32 1, %s116
  %s118 = smul.u32 4, %s117
  %s119 = sadd.s32 0, 0
  %p120 = scmp.lt.s32.totalorder %s119, 0
  %s121 = scalar_select %p120, %s119, 0
  %s122 = smul.u32 8, %s121
  %s123 = ssub.s32 1, %s122
  %p124 = scmp.lt.s32.totalorder %s122, 0
  %s125 = scalar_select %p124, %s122, 0
  %s126 = scalar_lea.vmem %s2, %s125
  %s127 = sadd.s32 0, 0
  %p128 = scmp.lt.s32.totalorder %s127, 0
  %s129 = scalar_select %p128, %s127, 0
  %s130 = smul.u32 8, %s129
  %s131 = ssub.s32 1, %s130
  %s134 = sadd.s32 0, 0
  %p135 = scmp.eq.s32.totalorder 0, 0
  // Predicated region
  $region14: #{silog_loss_pallas.1} parent=0 // pred_check
    %p136 = pneg %p135
  $region15: #{silog_loss_pallas.1} parent=0 // pred_check_branch
    %138 = sbr.rel (%p136) target = $region17
  $region16: #{silog_loss_pallas.1} parent=0 // pred_region
    %139 = vst [vmem:[%s3] sm:$0xff] 0.0
    %140 = vst [vmem:[%s3 + $0x8] sm:$0xff] 0.0
    %141 = vst [vmem:[%s3 + $0x10] sm:$0xff] 0.0
  $region17: #{silog_loss_pallas.1} parent=0 // pred_fallthru
    _
  %p142 = scmp.lt.s32.totalorder %s134, 0
  // Predicated region
  $region18: #{silog_loss_pallas.1} parent=0 // pred_check
    %p143 = pneg %p142
  $region19: #{silog_loss_pallas.1} parent=0 // pred_check_branch
    %145 = sbr.rel (%p143) target = $region21
  $region20: #{silog_loss_pallas.1} parent=0 // pred_region
    %v146 = vld [vmem:[%s126] sm:$0x1]
    %v147 = vld [vmem:[%s126 + $0x1] sm:$0x1]
    %v148 = vld [vmem:[%s126 + $0x2] sm:$0x1]
    %v149 = vld [vmem:[%s126 + $0x3] sm:$0x1]
    %v150 = vld [vmem:[%s126 + $0x4] sm:$0x1]
    %v151 = vld [vmem:[%s126 + $0x5] sm:$0x1]
    %v152 = vld [vmem:[%s126 + $0x6] sm:$0x1]
    %v153 = vld [vmem:[%s126 + $0x7] sm:$0x1]
    %vm154 = vnez %v146
    %vm155 = vnez %v147
    %vm156 = vnez %v148
    %vm157 = vnez %v149
    %vm158 = vnez %v150
    %vm159 = vnez %v151
    %vm160 = vnez %v152
    %vm161 = vnez %v153
    %v162 = vld [vmem:[%s96] sm:$0xff]
    %v163 = vld [vmem:[%s96 + $0x8] sm:$0xff]
    %v164 = vld [vmem:[%s96 + $0x10] sm:$0xff]
    %v165 = vld [vmem:[%s96 + $0x18] sm:$0xff]
    %v166 = vld [vmem:[%s112] sm:$0xff]
    %v167 = vld [vmem:[%s112 + $0x8] sm:$0xff]
    %v168 = vld [vmem:[%s112 + $0x10] sm:$0xff]
    %v169 = vld [vmem:[%s112 + $0x18] sm:$0xff]
    %v170 = vrcp.pop %v166
    %v171 = vmul.f32 %v166, %v170
    %v172 = vsub.f32 1.0, %v171
    %v173 = vmul.f32 %v170, %v172
    %v174 = vadd.f32 %v170, %v173
    %vm175 = vweird.f32 %v166
    %vm176 = vweird.f32 %v170
    %vm177 = vmor %vm175, %vm176
    %v178 = vsel %vm177, %v170, %v174
    %v179 = vand.u32 2147483647, %v166
    %vm180 = vcmp.eq.f32.partialorder %v179, 8.507059e+37
    %v181 = vand.u32 %v166, 2147483648
    %v182 = vor.u32 1.1754944e-38, %v181
    %v183 = vsel %vm180, %v182, %v178
    %v184 = vmul.f32 %v162, %v183
    %v185 = vrcp.pop %v167
    %v186 = vmul.f32 %v167, %v185
    %v187 = vsub.f32 1.0, %v186
    %v188 = vmul.f32 %v185, %v187
    %v189 = vadd.f32 %v185, %v188
    %vm190 = vweird.f32 %v167
    %vm191 = vweird.f32 %v185
    %vm192 = vmor %vm190, %vm191
    %v193 = vsel %vm192, %v185, %v189
    %v194 = vand.u32 2147483647, %v167
    %vm195 = vcmp.eq.f32.partialorder %v194, 8.507059e+37
    %v196 = vand.u32 %v167, 2147483648
    %v197 = vor.u32 1.1754944e-38, %v196
    %v198 = vsel %vm195, %v197, %v193
    %v199 = vmul.f32 %v163, %v198
    %v200 = vrcp.pop %v168
    %v201 = vmul.f32 %v168, %v200
    %v202 = vsub.f32 1.0, %v201
    %v203 = vmul.f32 %v200, %v202
    %v204 = vadd.f32 %v200, %v203
    %vm205 = vweird.f32 %v168
    %vm206 = vweird.f32 %v200
    %vm207 = vmor %vm205, %vm206
    %v208 = vsel %vm207, %v200, %v204
    %v209 = vand.u32 2147483647, %v168
    %vm210 = vcmp.eq.f32.partialorder %v209, 8.507059e+37
    %v211 = vand.u32 %v168, 2147483648
    %v212 = vor.u32 1.1754944e-38, %v211
    %v213 = vsel %vm210, %v212, %v208
    %v214 = vmul.f32 %v164, %v213
    %v215 = vrcp.pop %v169
    %v216 = vmul.f32 %v169, %v215
    %v217 = vsub.f32 1.0, %v216
    %v218 = vmul.f32 %v215, %v217
    %v219 = vadd.f32 %v215, %v218
    %vm220 = vweird.f32 %v169
    %vm221 = vweird.f32 %v215
    %vm222 = vmor %vm220, %vm221
    %v223 = vsel %vm222, %v215, %v219
    %v224 = vand.u32 2147483647, %v169
    %vm225 = vcmp.eq.f32.partialorder %v224, 8.507059e+37
    %v226 = vand.u32 %v169, 2147483648
    %v227 = vor.u32 1.1754944e-38, %v226
    %v228 = vsel %vm225, %v227, %v223
    %v229 = vmul.f32 %v165, %v228
    %v230 = vlog2.pop %v184
    %v231 = vmul.f32 %v230, 0.6931472
    %v232 = vlog2.pop %v199
    %v233 = vmul.f32 %v232, 0.6931472
    %v234 = vlog2.pop %v214
    %v235 = vmul.f32 %v234, 0.6931472
    %v236 = vlog2.pop %v229
    %v237 = vmul.f32 %v236, 0.6931472
    %v238 = vsel %vm154, 16843009, 0
    %v239 = vsel %vm155, 16843009, 0
    %v240 = vsel %vm156, 16843009, 0
    %v241 = vsel %vm157, 16843009, 0
    %v242 = vsel %vm158, 16843009, 0
    %v243 = vsel %vm159, 16843009, 0
    %v244 = vsel %vm160, 16843009, 0
    %v245 = vsel %vm161, 16843009, 0
    %v246 = vunpack.c.0.s8 %v238
    %v247 = vunpack.c.0.s8 %v239
    %v248 = vunpack.c.0.s8 %v240
    %v249 = vunpack.c.0.s8 %v241
    %v250 = vunpack.c.0.s8 %v242
    %v251 = vunpack.c.0.s8 %v243
    %v252 = vunpack.c.0.s8 %v244
    %v253 = vunpack.c.0.s8 %v245
    %vm254 = vcmp.ne.s32.totalorder %v246, 0
    %vm255 = vcmp.ne.s32.totalorder %v247, 0
    %vm256 = vcmp.ne.s32.totalorder %v248, 0
    %vm257 = vcmp.ne.s32.totalorder %v249, 0
    %vm258 = vcmp.ne.s32.totalorder %v250, 0
    %vm259 = vcmp.ne.s32.totalorder %v251, 0
    %vm260 = vcmp.ne.s32.totalorder %v252, 0
    %vm261 = vcmp.ne.s32.totalorder %v253, 0
    %v262 = vsel %vm254, 1, 0
    %v263 = vsel %vm255, 1, 0
    %v264 = vsel %vm256, 1, 0
    %v265 = vsel %vm257, 1, 0
    %v266 = vsel %vm258, 1, 0
    %v267 = vsel %vm259, 1, 0
    %v268 = vsel %vm260, 1, 0
    %v269 = vsel %vm261, 1, 0
    %270 = vst [vmem:[#allocation1] ss:$2 sm:$0xff] %v262
    %s271 = scalar_lea.vmem [#allocation1], 1
    %272 = vst [vmem:[%s271] ss:$2 sm:$0xff] %v263
    %s273 = scalar_lea.vmem [#allocation1], 16
    %274 = vst [vmem:[%s273] ss:$2 sm:$0xff] %v264
    %s275 = scalar_lea.vmem [#allocation1], 17
    %276 = vst [vmem:[%s275] ss:$2 sm:$0xff] %v265
    %s277 = scalar_lea.vmem [#allocation1], 32
    %278 = vst [vmem:[%s277] ss:$2 sm:$0xff] %v266
    %s279 = scalar_lea.vmem [#allocation1], 33
    %280 = vst [vmem:[%s279] ss:$2 sm:$0xff] %v267
    %s281 = scalar_lea.vmem [#allocation1], 48
    %282 = vst [vmem:[%s281] ss:$2 sm:$0xff] %v268
    %s283 = scalar_lea.vmem [#allocation1], 49
    %284 = vst [vmem:[%s283] ss:$2 sm:$0xff] %v269
    %v285 = vld.sshfl [vmem:[#allocation1] sm:$0xff pattern:$0x75316420]
    %v286 = vld.sshfl [vmem:[#allocation1 + $0x10] sm:$0xff pattern:$0x75316420]
    %v287 = vld.sshfl [vmem:[#allocation1 + $0x20] sm:$0xff pattern:$0x75316420]
    %v288 = vld.sshfl [vmem:[#allocation1 + $0x30] sm:$0xff pattern:$0x75316420]
    %vm289 = vcmp.ne.s32.totalorder %v285, 0
    %vm290 = vcmp.ne.s32.totalorder %v286, 0
    %vm291 = vcmp.ne.s32.totalorder %v287, 0
    %vm292 = vcmp.ne.s32.totalorder %v288, 0
    %v293 = vsel %vm289, %v231, 0.0
    %v294 = vsel %vm290, %v233, 0.0
    %v295 = vsel %vm291, %v235, 0.0
    %v296 = vsel %vm292, %v237, 0.0
    %297 = vst [vmem:[#allocation1] ss:$2 sm:$0xff] %v262
    %s298 = scalar_lea.vmem [#allocation1], 1
    %299 = vst [vmem:[%s298] ss:$2 sm:$0xff] %v263
    %s300 = scalar_lea.vmem [#allocation1], 16
    %301 = vst [vmem:[%s300] ss:$2 sm:$0xff] %v264
    %s302 = scalar_lea.vmem [#allocation1], 17
    %303 = vst [vmem:[%s302] ss:$2 sm:$0xff] %v265
    %s304 = scalar_lea.vmem [#allocation1], 32
    %305 = vst [vmem:[%s304] ss:$2 sm:$0xff] %v266
    %s306 = scalar_lea.vmem [#allocation1], 33
    %307 = vst [vmem:[%s306] ss:$2 sm:$0xff] %v267
    %s308 = scalar_lea.vmem [#allocation1], 48
    %309 = vst [vmem:[%s308] ss:$2 sm:$0xff] %v268
    %s310 = scalar_lea.vmem [#allocation1], 49
    %311 = vst [vmem:[%s310] ss:$2 sm:$0xff] %v269
    %v312 = vld.sshfl [vmem:[#allocation1] sm:$0xff pattern:$0x75316420]
    %v313 = vld.sshfl [vmem:[#allocation1 + $0x10] sm:$0xff pattern:$0x75316420]
    %v314 = vld.sshfl [vmem:[#allocation1 + $0x20] sm:$0xff pattern:$0x75316420]
    %v315 = vld.sshfl [vmem:[#allocation1 + $0x30] sm:$0xff pattern:$0x75316420]
    %vm316 = vcmp.ne.s32.totalorder %v312, 0
    %vm317 = vcmp.ne.s32.totalorder %v313, 0
    %vm318 = vcmp.ne.s32.totalorder %v314, 0
    %vm319 = vcmp.ne.s32.totalorder %v315, 0
    %v320 = vsel %vm316, 1, 0
    %v321 = vsel %vm317, 1, 0
    %v322 = vsel %vm318, 1, 0
    %v323 = vsel %vm319, 1, 0
    %v324 = vadd.f32 %v293, %v294
    %v325 = vadd.f32 %v324, %v295
    %v326 = vadd.f32 %v325, %v296
    %v327 = vadd.f32 %v326, 0.0
    %v328 = vmul.f32 %v293, %v293
    %v329 = vmul.f32 %v294, %v294
    %v330 = vmul.f32 %v295, %v295
    %v331 = vmul.f32 %v296, %v296
    %v332 = vadd.f32 %v328, %v329
    %v333 = vadd.f32 %v332, %v330
    %v334 = vadd.f32 %v333, %v331
    %v335 = vadd.f32 %v334, 0.0
    %v336 = vadd.s32 %v320, %v321
    %v337 = vadd.s32 %v322, %v323
    %v338 = vadd.s32 %v336, %v337
    %v339 = vld [vmem:[%s3] sm:$0xff]
    %v340 = vadd.f32 %v339, %v327
    %341 = vst [vmem:[%s3] sm:$0xff] %v340
    %s342 = scalar_lea.vmem %s3, 8
    %v343 = vld [vmem:[%s342] sm:$0xff]
    %v344 = vadd.f32 %v343, %v335
    %345 = vst [vmem:[%s342] sm:$0xff] %v344
    %s346 = scalar_lea.vmem %s3, 16
    %v347 = vld [vmem:[%s346] sm:$0xff]
    %v348 = vcvt.s32.f32 %v338
    %v349 = vadd.f32 %v347, %v348
    %350 = vst [vmem:[%s346] sm:$0xff] %v349
  $region21: #{silog_loss_pallas.1} parent=0 // pred_fallthru
    _
  %p351 = scmp.eq.s32.totalorder %s134, 0
  // Predicated region
  $region22: #{silog_loss_pallas.1} parent=0 // pred_check
    %p352 = pneg %p351
  $region23: #{silog_loss_pallas.1} parent=0 // pred_check_branch
    %354 = sbr.rel (%p352) target = $region25
  $region24: #{silog_loss_pallas.1} parent=0 // pred_region
    %v355 = vlaneseq
    %v356 = vshrl.u32 %v355, 7
    %v357 = vadd.s32 %v356, 8
    %v358 = vadd.s32 %v356, 16
    %v359 = vadd.s32 %v356, 24
    %v360 = vld [vmem:[%s126] sm:$0x1]
    %v361 = vld [vmem:[%s126 + $0x1] sm:$0x1]
    %v362 = vld [vmem:[%s126 + $0x2] sm:$0x1]
    %v363 = vld [vmem:[%s126 + $0x3] sm:$0x1]
    %v364 = vld [vmem:[%s126 + $0x4] sm:$0x1]
    %v365 = vld [vmem:[%s126 + $0x5] sm:$0x1]
    %v366 = vld [vmem:[%s126 + $0x6] sm:$0x1]
    %v367 = vld [vmem:[%s126 + $0x7] sm:$0x1]
    %vm368 = vnez %v360
    %vm369 = vnez %v361
    %vm370 = vnez %v362
    %vm371 = vnez %v363
    %vm372 = vnez %v364
    %vm373 = vnez %v365
    %vm374 = vnez %v366
    %vm375 = vnez %v367
    %s376 = smul.u32 %s134, 32
    %s377 = ssub.s32 4, %s376
    %v378 = vstv %s377
    %vm379 = vcmp.lt.s32.totalorder %v356, %v378
    %vm380 = vcmp.lt.s32.totalorder %v357, %v378
    %vm381 = vcmp.lt.s32.totalorder %v358, %v378
    %vm382 = vcmp.lt.s32.totalorder %v359, %v378
    %v383 = vsel %vm379, 1, 0
    %v384 = vsel %vm380, 1, 0
    %v385 = vsel %vm381, 1, 0
    %v386 = vsel %vm382, 1, 0
    %v388 = vunpack.c.l.s4 839922192
    %v389 = vunpack.c.0.s8 %v388
    %v390 = vperm.slane %v383, %v389
    %v392 = vunpack.c.l.s4 1985246804
    %v393 = vunpack.c.0.s8 %v392
    %v394 = vperm.slane %v383, %v393
    %v396 = vunpack.c.l.s4 839922192
    %v397 = vunpack.c.0.s8 %v396
    %v398 = vperm.slane %v384, %v397
    %v400 = vunpack.c.l.s4 1985246804
    %v401 = vunpack.c.0.s8 %v400
    %v402 = vperm.slane %v384, %v401
    %v404 = vunpack.c.l.s4 839922192
    %v405 = vunpack.c.0.s8 %v404
    %v406 = vperm.slane %v385, %v405
    %v408 = vunpack.c.l.s4 1985246804
    %v409 = vunpack.c.0.s8 %v408
    %v410 = vperm.slane %v385, %v409
    %v412 = vunpack.c.l.s4 839922192
    %v413 = vunpack.c.0.s8 %v412
    %v414 = vperm.slane %v386, %v413
    %v416 = vunpack.c.l.s4 1985246804
    %v417 = vunpack.c.0.s8 %v416
    %v418 = vperm.slane %v386, %v417
    %vm419 = vcmp.ne.s32.totalorder %v390, 0
    %vm420 = vcmp.ne.s32.totalorder %v394, 0
    %vm421 = vcmp.ne.s32.totalorder %v398, 0
    %vm422 = vcmp.ne.s32.totalorder %v402, 0
    %vm423 = vcmp.ne.s32.totalorder %v406, 0
    %vm424 = vcmp.ne.s32.totalorder %v410, 0
    %vm425 = vcmp.ne.s32.totalorder %v414, 0
    %vm426 = vcmp.ne.s32.totalorder %v418, 0
    %v427 = vsel %vm419, 1, 0
    %v428 = vsel %vm420, 1, 0
    %v429 = vsel %vm421, 1, 0
    %v430 = vsel %vm422, 1, 0
    %v431 = vsel %vm423, 1, 0
    %v432 = vsel %vm424, 1, 0
    %v433 = vsel %vm425, 1, 0
    %v434 = vsel %vm426, 1, 0
    %v435 = vpack.c.b16 %v427, %v427
    %v436 = vpack.c.b8 %v435, %v435
    %v437 = vpack.c.b16 %v428, %v428
    %v438 = vpack.c.b8 %v437, %v437
    %v439 = vpack.c.b16 %v429, %v429
    %v440 = vpack.c.b8 %v439, %v439
    %v441 = vpack.c.b16 %v430, %v430
    %v442 = vpack.c.b8 %v441, %v441
    %v443 = vpack.c.b16 %v431, %v431
    %v444 = vpack.c.b8 %v443, %v443
    %v445 = vpack.c.b16 %v432, %v432
    %v446 = vpack.c.b8 %v445, %v445
    %v447 = vpack.c.b16 %v433, %v433
    %v448 = vpack.c.b8 %v447, %v447
    %v449 = vpack.c.b16 %v434, %v434
    %v450 = vpack.c.b8 %v449, %v449
    %vm451 = vnez %v436
    %vm452 = vnez %v438
    %vm453 = vnez %v440
    %vm454 = vnez %v442
    %vm455 = vnez %v444
    %vm456 = vnez %v446
    %vm457 = vnez %v448
    %vm458 = vnez %v450
    %vm459 = vmand %vm368, %vm451
    %vm460 = vmand %vm369, %vm452
    %vm461 = vmand %vm370, %vm453
    %vm462 = vmand %vm371, %vm454
    %vm463 = vmand %vm372, %vm455
    %vm464 = vmand %vm373, %vm456
    %vm465 = vmand %vm374, %vm457
    %vm466 = vmand %vm375, %vm458
    %v467 = vld [vmem:[%s96] sm:$0xff]
    %v468 = vld [vmem:[%s96 + $0x8] sm:$0xff]
    %v469 = vld [vmem:[%s96 + $0x10] sm:$0xff]
    %v470 = vld [vmem:[%s96 + $0x18] sm:$0xff]
    %v471 = vld [vmem:[%s112] sm:$0xff]
    %v472 = vld [vmem:[%s112 + $0x8] sm:$0xff]
    %v473 = vld [vmem:[%s112 + $0x10] sm:$0xff]
    %v474 = vld [vmem:[%s112 + $0x18] sm:$0xff]
    %v475 = vrcp.pop %v471
    %v476 = vmul.f32 %v471, %v475
    %v477 = vsub.f32 1.0, %v476
    %v478 = vmul.f32 %v475, %v477
    %v479 = vadd.f32 %v475, %v478
    %vm480 = vweird.f32 %v471
    %vm481 = vweird.f32 %v475
    %vm482 = vmor %vm480, %vm481
    %v483 = vsel %vm482, %v475, %v479
    %v484 = vand.u32 2147483647, %v471
    %vm485 = vcmp.eq.f32.partialorder %v484, 8.507059e+37
    %v486 = vand.u32 %v471, 2147483648
    %v487 = vor.u32 1.1754944e-38, %v486
    %v488 = vsel %vm485, %v487, %v483
    %v489 = vmul.f32 %v467, %v488
    %v490 = vrcp.pop %v472
    %v491 = vmul.f32 %v472, %v490
    %v492 = vsub.f32 1.0, %v491
    %v493 = vmul.f32 %v490, %v492
    %v494 = vadd.f32 %v490, %v493
    %vm495 = vweird.f32 %v472
    %vm496 = vweird.f32 %v490
    %vm497 = vmor %vm495, %vm496
    %v498 = vsel %vm497, %v490, %v494
    %v499 = vand.u32 2147483647, %v472
    %vm500 = vcmp.eq.f32.partialorder %v499, 8.507059e+37
    %v501 = vand.u32 %v472, 2147483648
    %v502 = vor.u32 1.1754944e-38, %v501
    %v503 = vsel %vm500, %v502, %v498
    %v504 = vmul.f32 %v468, %v503
    %v505 = vrcp.pop %v473
    %v506 = vmul.f32 %v473, %v505
    %v507 = vsub.f32 1.0, %v506
    %v508 = vmul.f32 %v505, %v507
    %v509 = vadd.f32 %v505, %v508
    %vm510 = vweird.f32 %v473
    %vm511 = vweird.f32 %v505
    %vm512 = vmor %vm510, %vm511
    %v513 = vsel %vm512, %v505, %v509
    %v514 = vand.u32 2147483647, %v473
    %vm515 = vcmp.eq.f32.partialorder %v514, 8.507059e+37
    %v516 = vand.u32 %v473, 2147483648
    %v517 = vor.u32 1.1754944e-38, %v516
    %v518 = vsel %vm515, %v517, %v513
    %v519 = vmul.f32 %v469, %v518
    %v520 = vrcp.pop %v474
    %v521 = vmul.f32 %v474, %v520
    %v522 = vsub.f32 1.0, %v521
    %v523 = vmul.f32 %v520, %v522
    %v524 = vadd.f32 %v520, %v523
    %vm525 = vweird.f32 %v474
    %vm526 = vweird.f32 %v520
    %vm527 = vmor %vm525, %vm526
    %v528 = vsel %vm527, %v520, %v524
    %v529 = vand.u32 2147483647, %v474
    %vm530 = vcmp.eq.f32.partialorder %v529, 8.507059e+37
    %v531 = vand.u32 %v474, 2147483648
    %v532 = vor.u32 1.1754944e-38, %v531
    %v533 = vsel %vm530, %v532, %v528
    %v534 = vmul.f32 %v470, %v533
    %v535 = vlog2.pop %v489
    %v536 = vmul.f32 %v535, 0.6931472
    %v537 = vlog2.pop %v504
    %v538 = vmul.f32 %v537, 0.6931472
    %v539 = vlog2.pop %v519
    %v540 = vmul.f32 %v539, 0.6931472
    %v541 = vlog2.pop %v534
    %v542 = vmul.f32 %v541, 0.6931472
    %v543 = vsel %vm459, 16843009, 0
    %v544 = vsel %vm460, 16843009, 0
    %v545 = vsel %vm461, 16843009, 0
    %v546 = vsel %vm462, 16843009, 0
    %v547 = vsel %vm463, 16843009, 0
    %v548 = vsel %vm464, 16843009, 0
    %v549 = vsel %vm465, 16843009, 0
    %v550 = vsel %vm466, 16843009, 0
    %v551 = vunpack.c.0.s8 %v543
    %v552 = vunpack.c.0.s8 %v544
    %v553 = vunpack.c.0.s8 %v545
    %v554 = vunpack.c.0.s8 %v546
    %v555 = vunpack.c.0.s8 %v547
    %v556 = vunpack.c.0.s8 %v548
    %v557 = vunpack.c.0.s8 %v549
    %v558 = vunpack.c.0.s8 %v550
    %vm559 = vcmp.ne.s32.totalorder %v551, 0
    %vm560 = vcmp.ne.s32.totalorder %v552, 0
    %vm561 = vcmp.ne.s32.totalorder %v553, 0
    %vm562 = vcmp.ne.s32.totalorder %v554, 0
    %vm563 = vcmp.ne.s32.totalorder %v555, 0
    %vm564 = vcmp.ne.s32.totalorder %v556, 0
    %vm565 = vcmp.ne.s32.totalorder %v557, 0
    %vm566 = vcmp.ne.s32.totalorder %v558, 0
    %v567 = vsel %vm559, 1, 0
    %v568 = vsel %vm560, 1, 0
    %v569 = vsel %vm561, 1, 0
    %v570 = vsel %vm562, 1, 0
    %v571 = vsel %vm563, 1, 0
    %v572 = vsel %vm564, 1, 0
    %v573 = vsel %vm565, 1, 0
    %v574 = vsel %vm566, 1, 0
    %575 = vst [vmem:[#allocation1] ss:$2 sm:$0xff] %v567
    %s576 = scalar_lea.vmem [#allocation1], 1
    %577 = vst [vmem:[%s576] ss:$2 sm:$0xff] %v568
    %s578 = scalar_lea.vmem [#allocation1], 16
    %579 = vst [vmem:[%s578] ss:$2 sm:$0xff] %v569
    %s580 = scalar_lea.vmem [#allocation1], 17
    %581 = vst [vmem:[%s580] ss:$2 sm:$0xff] %v570
    %s582 = scalar_lea.vmem [#allocation1], 32
    %583 = vst [vmem:[%s582] ss:$2 sm:$0xff] %v571
    %s584 = scalar_lea.vmem [#allocation1], 33
    %585 = vst [vmem:[%s584] ss:$2 sm:$0xff] %v572
    %s586 = scalar_lea.vmem [#allocation1], 48
    %587 = vst [vmem:[%s586] ss:$2 sm:$0xff] %v573
    %s588 = scalar_lea.vmem [#allocation1], 49
    %589 = vst [vmem:[%s588] ss:$2 sm:$0xff] %v574
    %v590 = vld.sshfl [vmem:[#allocation1] sm:$0xff pattern:$0x75316420]
    %v591 = vld.sshfl [vmem:[#allocation1 + $0x10] sm:$0xff pattern:$0x75316420]
    %v592 = vld.sshfl [vmem:[#allocation1 + $0x20] sm:$0xff pattern:$0x75316420]
    %v593 = vld.sshfl [vmem:[#allocation1 + $0x30] sm:$0xff pattern:$0x75316420]
    %vm594 = vcmp.ne.s32.totalorder %v590, 0
    %vm595 = vcmp.ne.s32.totalorder %v591, 0
    %vm596 = vcmp.ne.s32.totalorder %v592, 0
    %vm597 = vcmp.ne.s32.totalorder %v593, 0
    %v598 = vsel %vm594, %v536, 0.0
    %v599 = vsel %vm595, %v538, 0.0
    %v600 = vsel %vm596, %v540, 0.0
    %v601 = vsel %vm597, %v542, 0.0
    %602 = vst [vmem:[#allocation1] ss:$2 sm:$0xff] %v567
    %s603 = scalar_lea.vmem [#allocation1], 1
    %604 = vst [vmem:[%s603] ss:$2 sm:$0xff] %v568
    %s605 = scalar_lea.vmem [#allocation1], 16
    %606 = vst [vmem:[%s605] ss:$2 sm:$0xff] %v569
    %s607 = scalar_lea.vmem [#allocation1], 17
    %608 = vst [vmem:[%s607] ss:$2 sm:$0xff] %v570
    %s609 = scalar_lea.vmem [#allocation1], 32
    %610 = vst [vmem:[%s609] ss:$2 sm:$0xff] %v571
    %s611 = scalar_lea.vmem [#allocation1], 33
    %612 = vst [vmem:[%s611] ss:$2 sm:$0xff] %v572
    %s613 = scalar_lea.vmem [#allocation1], 48
    %614 = vst [vmem:[%s613] ss:$2 sm:$0xff] %v573
    %s615 = scalar_lea.vmem [#allocation1], 49
    %616 = vst [vmem:[%s615] ss:$2 sm:$0xff] %v574
    %v617 = vld.sshfl [vmem:[#allocation1] sm:$0xff pattern:$0x75316420]
    %v618 = vld.sshfl [vmem:[#allocation1 + $0x10] sm:$0xff pattern:$0x75316420]
    %v619 = vld.sshfl [vmem:[#allocation1 + $0x20] sm:$0xff pattern:$0x75316420]
    %v620 = vld.sshfl [vmem:[#allocation1 + $0x30] sm:$0xff pattern:$0x75316420]
    %vm621 = vcmp.ne.s32.totalorder %v617, 0
    %vm622 = vcmp.ne.s32.totalorder %v618, 0
    %vm623 = vcmp.ne.s32.totalorder %v619, 0
    %vm624 = vcmp.ne.s32.totalorder %v620, 0
    %v625 = vsel %vm621, 1, 0
    %v626 = vsel %vm622, 1, 0
    %v627 = vsel %vm623, 1, 0
    %v628 = vsel %vm624, 1, 0
    %v629 = vadd.f32 %v598, %v599
    %v630 = vadd.f32 %v629, %v600
    %v631 = vadd.f32 %v630, %v601
    %v632 = vadd.f32 %v631, 0.0
    %v633 = vmul.f32 %v598, %v598
    %v634 = vmul.f32 %v599, %v599
    %v635 = vmul.f32 %v600, %v600
    %v636 = vmul.f32 %v601, %v601
    %v637 = vadd.f32 %v633, %v634
    %v638 = vadd.f32 %v637, %v635
    %v639 = vadd.f32 %v638, %v636
    %v640 = vadd.f32 %v639, 0.0
    %v641 = vadd.s32 %v625, %v626
    %v642 = vadd.s32 %v627, %v628
    %v643 = vadd.s32 %v641, %v642
    %v644 = vld [vmem:[%s3] sm:$0xff]
    %v645 = vadd.f32 %v644, %v632
    %646 = vst [vmem:[%s3] sm:$0xff] %v645
    %s647 = scalar_lea.vmem %s3, 8
    %v648 = vld [vmem:[%s647] sm:$0xff]
    %v649 = vadd.f32 %v648, %v640
    %650 = vst [vmem:[%s647] sm:$0xff] %v649
    %s651 = scalar_lea.vmem %s3, 16
    %v652 = vld [vmem:[%s651] sm:$0xff]
    %v653 = vcvt.s32.f32 %v643
    %v654 = vadd.f32 %v652, %v653
    %655 = vst [vmem:[%s651] sm:$0xff] %v654
  $region25: #{silog_loss_pallas.1} parent=0 // pred_fallthru
    _
  // Predicated region
  $region26: #{silog_loss_pallas.1} parent=0 // pred_check
    _
  $region27: #{silog_loss_pallas.1} parent=0 // pred_check_branch
    %657 = sbr.rel (0) target = $region29
  $region28: #{silog_loss_pallas.1} parent=0 // pred_region
    _
  $region29: #{silog_loss_pallas.1} parent=0 // pred_fallthru
    _
  // Predicated region
  $region30: #{silog_loss_pallas.1} parent=0 // pred_check
    _
  $region31: #{silog_loss_pallas.1} parent=0 // pred_check_branch
    %659 = sbr.rel (0) target = $region33
  $region32: #{silog_loss_pallas.1} parent=0 // pred_region
    _
  $region33: #{silog_loss_pallas.1} parent=0 // pred_fallthru
    _

</llo_original>
